<compile_context>
chip_gen: v7x
topology: tpu7x:2x2x1
jax: 0.10.0
libtpu: 0.0.40
codegen_flags: <defaults>
</compile_context>

<pallas_src>
import math

import jax
import jax.numpy as jnp
from jax.experimental import pallas as pl
from jax.experimental.pallas import tpu as pltpu

LOG_SIG_MAX = 2.0
LOG_SIG_MIN = -20.0


def _round_up(x, m):
    return ((x + m - 1) // m) * m


# ---------------------------------------------------------------------------
# Kernel
# ---------------------------------------------------------------------------
def _policy_kernel(x_ref, w1_ref, b1_ref, w2_ref, b2_ref, wh_ref, bh_ref,
                   mean_ref, log_std_ref):
    # x: (TB, Ni) f32 -> bf16 for the MXU, accumulate in f32.
    x = x_ref[...].astype(jnp.bfloat16)

    # h1 = relu(state @ W1 + b1)
    h1 = jnp.dot(x, w1_ref[...], preferred_element_type=jnp.float32) + b1_ref[...]
    h1 = jnp.maximum(h1, 0.0)

    # h2 = relu(h1 @ W2 + b2)
    h2 = jnp.dot(h1.astype(jnp.bfloat16), w2_ref[...],
                 preferred_element_type=jnp.float32) + b2_ref[...]
    h2 = jnp.maximum(h2, 0.0)

    # Fused head: [mean | log_std] in one lane-dense matmul, (TB, 2*A_pad).
    head = jnp.dot(h2.astype(jnp.bfloat16), wh_ref[...],
                   preferred_element_type=jnp.float32) + bh_ref[...]

    a_pad = mean_ref.shape[-1]                      # 128-aligned split point
    mean_ref[...] = head[:, :a_pad].astype(mean_ref.dtype)
    log_std_ref[...] = jnp.clip(head[:, a_pad:],
                                LOG_SIG_MIN, LOG_SIG_MAX).astype(log_std_ref.dtype)


# ---------------------------------------------------------------------------
# Param packing: pad hidden/action dims to 128 lanes, fuse heads, cast to bf16.
# Call once; the packed params are reused for every forward call.
# ---------------------------------------------------------------------------
def pack_params(params):
    w1, b1, w2, b2, wm, bm, ws, bs = params
    ni, h = w1.shape
    a = wm.shape[1]
    h_pad = _round_up(h, 128)
    a_pad = _round_up(a, 128)

    w1p = jnp.zeros((ni, h_pad), jnp.bfloat16).at[:, :h].set(w1.astype(jnp.bfloat16))
    b1p = jnp.zeros((1, h_pad), jnp.float32).at[:, :h].set(b1)
    w2p = jnp.zeros((h_pad, h_pad), jnp.bfloat16).at[:h, :h].set(w2.astype(jnp.bfloat16))
    b2p = jnp.zeros((1, h_pad), jnp.float32).at[:, :h].set(b2)

    whp = jnp.zeros((h_pad, 2 * a_pad), jnp.bfloat16)
    whp = whp.at[:h, :a].set(wm.astype(jnp.bfloat16))
    whp = whp.at[:h, a_pad:a_pad + a].set(ws.astype(jnp.bfloat16))
    bhp = jnp.zeros((1, 2 * a_pad), jnp.float32)
    bhp = bhp.at[:, :a].set(bm)
    bhp = bhp.at[:, a_pad:a_pad + a].set(bs)

    return (w1p, b1p, w2p, b2p, whp, bhp)


# ---------------------------------------------------------------------------
# Wrapper
# ---------------------------------------------------------------------------
def gaussian_policy_forward(state, packed_params, num_actions):
    """state: (B, num_inputs) f32 -> (mean, log_std), each (B, num_actions) f32."""
    w1, b1, w2, b2, wh, bh = packed_params
    b, ni = state.shape
    h_pad = w1.shape[1]
    a_pad = wh.shape[1] // 2

    # Batch tile: multiple of 8 (f32 sublane); large enough to amortize per-step
    # overhead, small enough that double-buffered tiles stay tiny in VMEM.
    tb = min(512, _round_up(max(b, 1), 8))
    b_pad = _round_up(b, tb)
    if b_pad != b:
        state = jnp.pad(state, ((0, b_pad - b), (0, 0)))
    grid = (b_pad // tb,)

    const2d = lambda arr: pl.BlockSpec(arr.shape, lambda i: (0, 0))  # VMEM-resident

    flops = 2 * b_pad * (ni * h_pad + h_pad * h_pad + h_pad * 2 * a_pad)
    bytes_accessed = (state.size * 4
                      + (w1.size + w2.size + wh.size) * 2
                      + (b1.size + b2.size + bh.size) * 4
                      + 2 * b_pad * a_pad * 4)

    mean_p, log_std_p = pl.pallas_call(
        _policy_kernel,
        out_shape=(
            jax.ShapeDtypeStruct((b_pad, a_pad), jnp.float32),
            jax.ShapeDtypeStruct((b_pad, a_pad), jnp.float32),
        ),
        grid=grid,
        in_specs=[
            pl.BlockSpec((tb, ni), lambda i: (i, 0)),   # state tile
            const2d(w1), const2d(b1),
            const2d(w2), const2d(b2),
            const2d(wh), const2d(bh),
        ],
        out_specs=(
            pl.BlockSpec((tb, a_pad), lambda i: (i, 0)),
            pl.BlockSpec((tb, a_pad), lambda i: (i, 0)),
        ),
        compiler_params=pltpu.CompilerParams(
            dimension_semantics=("parallel",),
        ),
        cost_estimate=pl.CostEstimate(
            flops=flops, transcendentals=0, bytes_accessed=bytes_accessed),
    )(state, w1, b1, w2, b2, wh, bh)

    return mean_p[:b, :num_actions], log_std_p[:b, :num_actions]


# ---------------------------------------------------------------------------
# Init (matches torch xavier_uniform_ + zero bias) and f32 reference.
# ---------------------------------------------------------------------------
def _xavier_uniform(key, fan_in, fan_out):
    bound = math.sqrt(6.0 / (fan_in + fan_out))
    return jax.random.uniform(key, (fan_in, fan_out), jnp.float32, -bound, bound)


def init_params(key, num_inputs, num_actions, hidden_dim):
    k1, k2, k3, k4 = jax.random.split(key, 4)
    w1 = _xavier_uniform(k1, num_inputs, hidden_dim)
    b1 = jnp.zeros((1, hidden_dim), jnp.float32)
    w2 = _xavier_uniform(k2, hidden_dim, hidden_dim)
    b2 = jnp.zeros((1, hidden_dim), jnp.float32)
    wm = _xavier_uniform(k3, hidden_dim, num_actions)
    bm = jnp.zeros((1, num_actions), jnp.float32)
    ws = _xavier_uniform(k4, hidden_dim, num_actions)
    bs = jnp.zeros((1, num_actions), jnp.float32)
    return (w1, b1, w2, b2, wm, bm, ws, bs)


def _reference_forward(state, params):
    w1, b1, w2, b2, wm, bm, ws, bs = params
    h1 = jnp.maximum(state @ w1 + b1, 0.0)
    h2 = jnp.maximum(h1 @ w2 + b2, 0.0)
    mean = h2 @ wm + bm
    log_std = jnp.clip(h2 @ ws + bs, LOG_SIG_MIN, LOG_SIG_MAX)
    return mean, log_std


if __name__ == "__main__":
    num_inputs, num_actions, hidden_dim = 16, 8, 32
    batch = 2

    key = jax.random.PRNGKey(0)
    k_params, k_state = jax.random.split(key)
    params = init_params(k_params, num_inputs, num_actions, hidden_dim)
    packed = pack_params(params)
    state = jax.random.normal(k_state, (batch, num_inputs), jnp.float32)

    mean, log_std = gaussian_policy_forward(state, packed, num_actions)
    jax.block_until_ready((mean, log_std))

    ref_mean, ref_log_std = _reference_forward(state, params)
    assert mean.shape == (batch, num_actions)
    assert log_std.shape == (batch, num_actions)
    # bf16 MXU inputs with f32 accumulation -> loosened tolerance.
    assert jnp.allclose(mean, ref_mean, atol=3e-2, rtol=3e-2)
    assert jnp.allclose(log_std, ref_log_std, atol=3e-2, rtol=3e-2)

    print("KERNEL_OK")
</pallas_src>

<mosaic_0001>
module attributes {stable_mosaic.version = 11 : i64} {
  func.func @_policy_kernel(%arg0: i32, %arg1: memref<8x16xf32, #tpu.memory_space<vmem>>, %arg2: memref<16x128xbf16, #tpu.memory_space<vmem>>, %arg3: memref<1x128xf32, #tpu.memory_space<vmem>>, %arg4: memref<128x128xbf16, #tpu.memory_space<vmem>>, %arg5: memref<1x128xf32, #tpu.memory_space<vmem>>, %arg6: memref<128x256xbf16, #tpu.memory_space<vmem>>, %arg7: memref<1x256xf32, #tpu.memory_space<vmem>>, %arg8: memref<8x128xf32, #tpu.memory_space<vmem>>, %arg9: memref<8x128xf32, #tpu.memory_space<vmem>>) attributes {dimension_semantics = [#tpu.dimension_semantics<parallel>], iteration_bounds = array<i64: 1>, scalar_prefetch = 0 : i64, scratch_operands = 0 : i64, tpu.core_type = #tpu.core_type<tc>, window_params = [{transform_indices = @transform_0, window_bounds = array<i64: 8, 16>}, {pipeline_mode = #tpu.pipeline_mode<synchronous>, transform_indices = @transform_1, window_bounds = array<i64: 16, 128>}, {pipeline_mode = #tpu.pipeline_mode<synchronous>, transform_indices = @transform_2, window_bounds = array<i64: 1, 128>}, {pipeline_mode = #tpu.pipeline_mode<synchronous>, transform_indices = @transform_3, window_bounds = array<i64: 128, 128>}, {pipeline_mode = #tpu.pipeline_mode<synchronous>, transform_indices = @transform_4, window_bounds = array<i64: 1, 128>}, {pipeline_mode = #tpu.pipeline_mode<synchronous>, transform_indices = @transform_5, window_bounds = array<i64: 128, 256>}, {pipeline_mode = #tpu.pipeline_mode<synchronous>, transform_indices = @transform_6, window_bounds = array<i64: 1, 256>}, {transform_indices = @transform_7, window_bounds = array<i64: 8, 128>}, {transform_indices = @transform_8, window_bounds = array<i64: 8, 128>}]} {
    %c0 = arith.constant 0 : index
    %c0_0 = arith.constant 0 : index
    %0 = vector.load %arg1[%c0, %c0_0] : memref<8x16xf32, #tpu.memory_space<vmem>>, vector<8x16xf32>
    %1 = arith.truncf %0 : vector<8x16xf32> to vector<8x16xbf16>
    %c0_1 = arith.constant 0 : index
    %c0_2 = arith.constant 0 : index
    %2 = vector.load %arg2[%c0_1, %c0_2] : memref<16x128xbf16, #tpu.memory_space<vmem>>, vector<16x128xbf16>
    %cst = arith.constant dense<0.000000e+00> : vector<8x128xf32>
    %3 = tpu.matmul %1, %2, %cst {dimension_numbers = #tpu.dot_dimension_numbers<[1], [0], [0], [1], [0, 0, 1, 1], [], []>} : vector<8x16xbf16>, vector<16x128xbf16>, vector<8x128xf32> -> vector<8x128xf32>
    %c0_3 = arith.constant 0 : index
    %c0_4 = arith.constant 0 : index
    %4 = vector.load %arg3[%c0_3, %c0_4] : memref<1x128xf32, #tpu.memory_space<vmem>>, vector<1x128xf32>
    %5 = vector.broadcast %4 : vector<1x128xf32> to vector<8x128xf32>
    %6 = arith.addf %3, %5 : vector<8x128xf32>
    %cst_5 = arith.constant 0.000000e+00 : f32
    %7 = vector.broadcast %cst_5 : f32 to vector<8x128xf32>
    %8 = arith.maximumf %6, %7 : vector<8x128xf32>
    %9 = arith.truncf %8 : vector<8x128xf32> to vector<8x128xbf16>
    %c0_6 = arith.constant 0 : index
    %c0_7 = arith.constant 0 : index
    %10 = vector.load %arg4[%c0_6, %c0_7] : memref<128x128xbf16, #tpu.memory_space<vmem>>, vector<128x128xbf16>
    %cst_8 = arith.constant dense<0.000000e+00> : vector<8x128xf32>
    %11 = tpu.matmul %9, %10, %cst_8 {dimension_numbers = #tpu.dot_dimension_numbers<[1], [0], [0], [1], [0, 0, 1, 1], [], []>} : vector<8x128xbf16>, vector<128x128xbf16>, vector<8x128xf32> -> vector<8x128xf32>
    %c0_9 = arith.constant 0 : index
    %c0_10 = arith.constant 0 : index
    %12 = vector.load %arg5[%c0_9, %c0_10] : memref<1x128xf32, #tpu.memory_space<vmem>>, vector<1x128xf32>
    %13 = vector.broadcast %12 : vector<1x128xf32> to vector<8x128xf32>
    %14 = arith.addf %11, %13 : vector<8x128xf32>
    %cst_11 = arith.constant 0.000000e+00 : f32
    %15 = vector.broadcast %cst_11 : f32 to vector<8x128xf32>
    %16 = arith.maximumf %14, %15 : vector<8x128xf32>
    %17 = arith.truncf %16 : vector<8x128xf32> to vector<8x128xbf16>
    %c0_12 = arith.constant 0 : index
    %c0_13 = arith.constant 0 : index
    %18 = vector.load %arg6[%c0_12, %c0_13] : memref<128x256xbf16, #tpu.memory_space<vmem>>, vector<128x256xbf16>
    %cst_14 = arith.constant dense<0.000000e+00> : vector<8x256xf32>
    %19 = tpu.matmul %17, %18, %cst_14 {dimension_numbers = #tpu.dot_dimension_numbers<[1], [0], [0], [1], [0, 0, 1, 1], [], []>} : vector<8x128xbf16>, vector<128x256xbf16>, vector<8x256xf32> -> vector<8x256xf32>
    %c0_15 = arith.constant 0 : index
    %c0_16 = arith.constant 0 : index
    %20 = vector.load %arg7[%c0_15, %c0_16] : memref<1x256xf32, #tpu.memory_space<vmem>>, vector<1x256xf32>
    %21 = vector.broadcast %20 : vector<1x256xf32> to vector<8x256xf32>
    %22 = arith.addf %19, %21 : vector<8x256xf32>
    %23 = vector.extract_strided_slice %22 {offsets = [0, 0], sizes = [8, 128], strides = [1, 1]} : vector<8x256xf32> to vector<8x128xf32>
    %c0_17 = arith.constant 0 : index
    %c0_18 = arith.constant 0 : index
    %24 = vector.load %arg8[%c0_17, %c0_18] : memref<8x128xf32, #tpu.memory_space<vmem>>, vector<8x128xf32>
    tpu.vector_store %arg8[%c0_17, %c0_18], %23 {strides = array<i32>} : memref<8x128xf32, #tpu.memory_space<vmem>>, vector<8x128xf32>,
    %25 = vector.extract_strided_slice %22 {offsets = [0, 128], sizes = [8, 128], strides = [1, 1]} : vector<8x256xf32> to vector<8x128xf32>
    %cst_19 = arith.constant -2.000000e+01 : f32
    %cst_20 = arith.constant 2.000000e+00 : f32
    %26 = vector.broadcast %cst_19 : f32 to vector<8x128xf32>
    %27 = arith.maximumf %26, %25 : vector<8x128xf32>
    %28 = vector.broadcast %cst_20 : f32 to vector<8x128xf32>
    %29 = arith.minimumf %28, %27 : vector<8x128xf32>
    %c0_21 = arith.constant 0 : index
    %c0_22 = arith.constant 0 : index
    %30 = vector.load %arg9[%c0_21, %c0_22] : memref<8x128xf32, #tpu.memory_space<vmem>>, vector<8x128xf32>
    tpu.vector_store %arg9[%c0_21, %c0_22], %29 {strides = array<i32>} : memref<8x128xf32, #tpu.memory_space<vmem>>, vector<8x128xf32>,
    return
  }
  func.func @transform_0(%arg0: i32) -> (i32, i32) {
    %c0_i32 = arith.constant 0 : i32
    %c0_i32_0 = arith.constant 0 : i32
    return %arg0, %c0_i32 : i32, i32
  }
  func.func @transform_1(%arg0: i32) -> (i32, i32) {
    %c0_i32 = arith.constant 0 : i32
    %c0_i32_0 = arith.constant 0 : i32
    %c0_i32_1 = arith.constant 0 : i32
    return %c0_i32, %c0_i32_0 : i32, i32
  }
  func.func @transform_2(%arg0: i32) -> (i32, i32) {
    %c0_i32 = arith.constant 0 : i32
    %c0_i32_0 = arith.constant 0 : i32
    %c0_i32_1 = arith.constant 0 : i32
    return %c0_i32, %c0_i32_0 : i32, i32
  }
  func.func @transform_3(%arg0: i32) -> (i32, i32) {
    %c0_i32 = arith.constant 0 : i32
    %c0_i32_0 = arith.constant 0 : i32
    %c0_i32_1 = arith.constant 0 : i32
    return %c0_i32, %c0_i32_0 : i32, i32
  }
  func.func @transform_4(%arg0: i32) -> (i32, i32) {
    %c0_i32 = arith.constant 0 : i32
    %c0_i32_0 = arith.constant 0 : i32
    %c0_i32_1 = arith.constant 0 : i32
    return %c0_i32, %c0_i32_0 : i32, i32
  }
  func.func @transform_5(%arg0: i32) -> (i32, i32) {
    %c0_i32 = arith.constant 0 : i32
    %c0_i32_0 = arith.constant 0 : i32
    %c0_i32_1 = arith.constant 0 : i32
    return %c0_i32, %c0_i32_0 : i32, i32
  }
  func.func @transform_6(%arg0: i32) -> (i32, i32) {
    %c0_i32 = arith.constant 0 : i32
    %c0_i32_0 = arith.constant 0 : i32
    %c0_i32_1 = arith.constant 0 : i32
    return %c0_i32, %c0_i32_0 : i32, i32
  }
  func.func @transform_7(%arg0: i32) -> (i32, i32) {
    %c0_i32 = arith.constant 0 : i32
    %c0_i32_0 = arith.constant 0 : i32
    return %arg0, %c0_i32 : i32, i32
  }
  func.func @transform_8(%arg0: i32) -> (i32, i32) {
    %c0_i32 = arith.constant 0 : i32
    %c0_i32_0 = arith.constant 0 : i32
    return %arg0, %c0_i32 : i32, i32
  }
}

</mosaic_0001>

<llo_original>
// kernel: tpu_custom_call.1
$region0: #{tpu_custom_call.1}
  #allocation0 [shape = 'u32[]', space=smem, size = 0x4, offset = 0x4, fixed_abs, tag = 'smem constant byte address 0x4 - core index']
  #allocation1 [shape = 'u32[144,128]{1,0:T(1,128)}', space=vmem, size = 0x12000, scoped, tag = 'internal scratch']
  %s0 = inlined_call_operand.hbm [shape: f32[8,16], index: 0, kind: input, shape index: {}]
  %s1 = inlined_call_operand.hbm [shape: bf16[16,128], index: 1, kind: input, shape index: {}]
  %s2 = inlined_call_operand.vmem [shape: f32[1,128], index: 2, kind: input, shape index: {}]
  %s3 = inlined_call_operand.hbm [shape: bf16[128,128], index: 3, kind: input, shape index: {}]
  %s4 = inlined_call_operand.vmem [shape: f32[1,128], index: 4, kind: input, shape index: {}]
  %s5 = inlined_call_operand.hbm [shape: bf16[128,256], index: 5, kind: input, shape index: {}]
  %s6 = inlined_call_operand.vmem [shape: f32[1,256], index: 6, kind: input, shape index: {}]
  %s7 = inlined_call_operand.hbm [shape: f32[8,128], index: 7, kind: output, shape index: {0}]
  %s8 = inlined_call_operand.hbm [shape: f32[8,128], index: 8, kind: output, shape index: {1}]
  %9 = xla_tuple %s7, %s8
  %s10 = sld [smem:[#allocation0]]
  $region62: #{tpu_custom_call.1} parent=0
    _
  %s12 = ssub.s32 1, %s10
  %s13 = scalar_select 0, %s12, %s10
  $region1: #{tpu_custom_call.1} parent=0
    #allocation2 [shape = 'u8[4096]{0}', space=vmem, size = 0x1000, scoped, tag = 'input window, operand 0, single buffered']
    #allocation3 [shape = 's32[1]{0}', space=sflag, size = 0x4, scoped, tag = 'scoped memory for tpu_custom_call.1']
    #allocation4 [shape = 's32[1]{0}', space=sflag, size = 0x4, scoped, tag = 'scoped memory for tpu_custom_call.1']
    #allocation5 [shape = 'u8[4096]{0}', space=vmem, size = 0x1000, scoped, tag = 'input window, operand 1, single buffered']
    #allocation6 [shape = 's32[1]{0}', space=sflag, size = 0x4, scoped, tag = 'scoped memory for tpu_custom_call.1']
    #allocation7 [shape = 'u8[32768]{0}', space=vmem, size = 0x8000, scoped, tag = 'input window, operand 3, single buffered']
    #allocation8 [shape = 'u8[65536]{0}', space=vmem, size = 0x10000, scoped, tag = 'input window, operand 5, single buffered']
    #allocation9 [shape = 's32[1]{0}', space=sflag, size = 0x4, scoped, tag = 'scoped memory for tpu_custom_call.1']
    #allocation10 [shape = 'u8[4096]{0}', space=vmem, size = 0x1000, scoped, tag = 'output window, operand 0, single buffered']
    #allocation11 [shape = 'u8[4096]{0}', space=vmem, size = 0x1000, scoped, tag = 'output window, operand 1, single buffered']
    #allocation12 [shape = 's32[1]{0}', space=sflag, size = 0x4, scoped, tag = 'scoped memory for tpu_custom_call.1']
    %14 = vsyncpa [#allocation3], 0
    %15 = vsyncpa [#allocation6], 0
    %16 = vsyncpa [#allocation9], 0
    %17 = vsyncpa [#allocation4], 0
    %18 = vsyncpa [#allocation12], 0
    // Predicated region
    $region2: #{tpu_custom_call.1} parent=1 // pred_check
      _
    $region3: #{tpu_custom_call.1} parent=1 // pred_check_branch
      %20 = sbr.rel (0) target = $region5
    $region4: #{tpu_custom_call.1} parent=1 // pred_region
      %s22 = ssub.s32 128, 128
      %23 = vsyncadd [#allocation3], %s22
      %s25 = sshll.u32 [#allocation2], 4
      %s26 = int_to_ptr.vmem [resolvable:$true] %s25
      %28 = dma.hbm_to_vmem [thread:$0]  %s0, 128, %s26, [#allocation3]
    $region5: #{tpu_custom_call.1} parent=1 // pred_fallthru
      _
    // Predicated region
    $region6: #{tpu_custom_call.1} parent=1 // pred_check
      _
    $region7: #{tpu_custom_call.1} parent=1 // pred_check_branch
      %30 = sbr.rel (0) target = $region9
    $region8: #{tpu_custom_call.1} parent=1 // pred_region
      %s32 = ssub.s32 128, 128
      %33 = vsyncadd [#allocation6], %s32
      %s34 = sshll.u32 [#allocation5], 4
      %s35 = int_to_ptr.vmem [resolvable:$true] %s34
      %40 = dma.hbm_to_vmem [thread:$0]  %s1, 128, %s35, [#allocation6], 64, 64, 4
    $region9: #{tpu_custom_call.1} parent=1 // pred_fallthru
      _
    // Predicated region
    $region10: #{tpu_custom_call.1} parent=1 // pred_check
      _
    $region11: #{tpu_custom_call.1} parent=1 // pred_check_branch
      %42 = sbr.rel (0) target = $region13
    $region12: #{tpu_custom_call.1} parent=1 // pred_region
      _
    $region13: #{tpu_custom_call.1} parent=1 // pred_fallthru
      _
    // Predicated region
    $region14: #{tpu_custom_call.1} parent=1 // pred_check
      _
    $region15: #{tpu_custom_call.1} parent=1 // pred_check_branch
      %44 = sbr.rel (0) target = $region17
    $region16: #{tpu_custom_call.1} parent=1 // pred_region
      %s46 = ssub.s32 1024, 1024
      %47 = vsyncadd [#allocation6], %s46
      %s48 = sshll.u32 [#allocation7], 4
      %s49 = int_to_ptr.vmem [resolvable:$true] %s48
      %54 = dma.hbm_to_vmem [thread:$0]  %s3, 1024, %s49, [#allocation6], 64, 64, 4
    $region17: #{tpu_custom_call.1} parent=1 // pred_fallthru
      _
    // Predicated region
    $region18: #{tpu_custom_call.1} parent=1 // pred_check
      _
    $region19: #{tpu_custom_call.1} parent=1 // pred_check_branch
      %56 = sbr.rel (0) target = $region21
    $region20: #{tpu_custom_call.1} parent=1 // pred_region
      _
    $region21: #{tpu_custom_call.1} parent=1 // pred_fallthru
      _
    // Predicated region
    $region22: #{tpu_custom_call.1} parent=1 // pred_check
      _
    $region23: #{tpu_custom_call.1} parent=1 // pred_check_branch
      %58 = sbr.rel (0) target = $region25
    $region24: #{tpu_custom_call.1} parent=1 // pred_region
      %s60 = ssub.s32 2048, 2048
      %61 = vsyncadd [#allocation9], %s60
      %s62 = sshll.u32 [#allocation8], 4
      %s63 = int_to_ptr.vmem [resolvable:$true] %s62
      %68 = dma.hbm_to_vmem [thread:$0]  %s5, 2048, %s63, [#allocation9], 128, 128, 8
    $region25: #{tpu_custom_call.1} parent=1 // pred_fallthru
      _
    // Predicated region
    $region26: #{tpu_custom_call.1} parent=1 // pred_check
      _
    $region27: #{tpu_custom_call.1} parent=1 // pred_check_branch
      %70 = sbr.rel (0) target = $region29
    $region28: #{tpu_custom_call.1} parent=1 // pred_region
      _
    $region29: #{tpu_custom_call.1} parent=1 // pred_fallthru
      _
    // Predicated region
    $region30: #{tpu_custom_call.1} parent=1 // pred_check
      _
    $region31: #{tpu_custom_call.1} parent=1 // pred_check_branch
      %72 = sbr.rel (0) target = $region33
    $region32: #{tpu_custom_call.1} parent=1 // pred_region
      %73 = dma.done [#allocation3], 128
    $region33: #{tpu_custom_call.1} parent=1 // pred_fallthru
      _
    // Predicated region
    $region34: #{tpu_custom_call.1} parent=1 // pred_check
      _
    $region35: #{tpu_custom_call.1} parent=1 // pred_check_branch
      %75 = sbr.rel (0) target = $region37
    $region36: #{tpu_custom_call.1} parent=1 // pred_region
      %76 = dma.done [#allocation6], 128
    $region37: #{tpu_custom_call.1} parent=1 // pred_fallthru
      _
    // Predicated region
    $region38: #{tpu_custom_call.1} parent=1 // pred_check
      _
    $region39: #{tpu_custom_call.1} parent=1 // pred_check_branch
      %78 = sbr.rel (0) target = $region41
    $region40: #{tpu_custom_call.1} parent=1 // pred_region
      %79 = dma.done [#allocation6], 1024
    $region41: #{tpu_custom_call.1} parent=1 // pred_fallthru
      _
    // Predicated region
    $region42: #{tpu_custom_call.1} parent=1 // pred_check
      _
    $region43: #{tpu_custom_call.1} parent=1 // pred_check_branch
      %81 = sbr.rel (0) target = $region45
    $region44: #{tpu_custom_call.1} parent=1 // pred_region
      %82 = dma.done [#allocation9], 2048
    $region45: #{tpu_custom_call.1} parent=1 // pred_fallthru
      _
    %v84 = vld [vmem:[#allocation2] sm:$0xff]
    %v85 = vpack.c.bf16 %v84, %v84
    %v86 = vld [vmem:[#allocation5] sm:$0xf]
    %v87 = vld [vmem:[#allocation5 + $0x4] sm:$0xf]
    %v88 = vld [vmem:[%s2] sm:$0x1]
    %v90 = vlaneseq
    %v91 = vshrl.u32 %v90, 7
    %v92 = vsub.s32 0, %v91
    %v93 = vrot.slane %v88, %v92
    %v97 = vunpack.c.l.b16 %v86
    %v98 = vunpack.c.l.b16 %v87
    %v99 = vpack.c.b16 %v98, %v97
    %vm101 = vcmask 130048
    %v103 = vsel %vm101, %v85, 0
    %105 = vmatprep.subr.bf16.mxu0 0
    %106 = vmatpush1.bf16.msra.mxu0 %v99
    %107 = vmatprep.subr.bf16.mxu0 0
    %108 = vmatpush1.bf16.msra.mxu0 0
    %109 = vmatprep.subr.bf16.mxu0 0
    %110 = vmatpush1.bf16.msra.mxu0 0
    %111 = vmatprep.subr.bf16.mxu0 0
    %112 = vmatpush1.bf16.msra.mxu0 0
    %113 = vmatprep.subr.bf16.mxu0 0
    %114 = vmatpush1.bf16.msra.mxu0 0
    %115 = vmatprep.subr.bf16.mxu0 0
    %116 = vmatpush1.bf16.msra.mxu0 0
    %117 = vmatprep.subr.bf16.mxu0 0
    %118 = vmatpush1.bf16.msra.mxu0 0
    %119 = vmatprep.subr.bf16.mxu0 0
    %120 = vmatpush1.bf16.msra.mxu0 0
    %121 = vmatprep.subr.bf16.mxu0 0
    %122 = vmatpush1.bf16.msra.mxu0 0
    %123 = vmatprep.subr.bf16.mxu0 0
    %124 = vmatpush1.bf16.msra.mxu0 0
    %125 = vmatprep.subr.bf16.mxu0 0
    %126 = vmatpush1.bf16.msra.mxu0 0
    %127 = vmatprep.subr.bf16.mxu0 0
    %128 = vmatpush1.bf16.msra.mxu0 0
    %129 = vmatprep.subr.bf16.mxu0 0
    %130 = vmatpush1.bf16.msra.mxu0 0
    %131 = vmatprep.subr.bf16.mxu0 0
    %132 = vmatpush1.bf16.msra.mxu0 0
    %133 = vmatprep.subr.bf16.mxu0 0
    %134 = vmatpush1.bf16.msra.mxu0 0
    %135 = vmatprep.subr.bf16.mxu0 0
    %136 = vmatpush1.bf16.msra.mxu0 0
    %137 = vmatprep.mubr.bf16.mxu0 0
    %138 = vmatmul.mubr.bf16.gmra.mrb[0].mxu0 %v103
    %v139 = vpop.f32.mrb[0].mxu0
    %v140 = vadd.f32 %v93, %v139
    %v141 = vpop.f32.mrb[0].mxu0
    %v142 = vpop.f32.mrb[0].mxu0
    %v143 = vpop.f32.mrb[0].mxu0
    %144 = vdwg.mxu0
    %v145 = vmax.f32 %v140, 0.0
    %v146 = vpack.c.bf16 %v145, %v145
    %v147 = vld [vmem:[#allocation7] sm:$0xf]
    %v148 = vld [vmem:[#allocation7 + $0x4] sm:$0xf]
    %v149 = vld [vmem:[#allocation7 + $0x8] sm:$0xf]
    %v150 = vld [vmem:[#allocation7 + $0xc] sm:$0xf]
    %v151 = vld [vmem:[#allocation7 + $0x10] sm:$0xf]
    %v152 = vld [vmem:[#allocation7 + $0x14] sm:$0xf]
    %v153 = vld [vmem:[#allocation7 + $0x18] sm:$0xf]
    %v154 = vld [vmem:[#allocation7 + $0x1c] sm:$0xf]
    %v155 = vld [vmem:[#allocation7 + $0x20] sm:$0xf]
    %v156 = vld [vmem:[#allocation7 + $0x24] sm:$0xf]
    %v157 = vld [vmem:[#allocation7 + $0x28] sm:$0xf]
    %v158 = vld [vmem:[#allocation7 + $0x2c] sm:$0xf]
    %v159 = vld [vmem:[#allocation7 + $0x30] sm:$0xf]
    %v160 = vld [vmem:[#allocation7 + $0x34] sm:$0xf]
    %v161 = vld [vmem:[#allocation7 + $0x38] sm:$0xf]
    %v162 = vld [vmem:[#allocation7 + $0x3c] sm:$0xf]
    %v163 = vld [vmem:[%s4] sm:$0x1]
    %v165 = vlaneseq
    %v166 = vshrl.u32 %v165, 7
    %v167 = vsub.s32 0, %v166
    %v168 = vrot.slane %v163, %v167
    %v186 = vunpack.c.l.b16 %v147
    %v187 = vunpack.c.l.b16 %v148
    %v188 = vunpack.c.l.b16 %v149
    %v189 = vunpack.c.l.b16 %v150
    %v190 = vunpack.c.l.b16 %v151
    %v191 = vunpack.c.l.b16 %v152
    %v192 = vunpack.c.l.b16 %v153
    %v193 = vunpack.c.l.b16 %v154
    %v194 = vunpack.c.l.b16 %v155
    %v195 = vunpack.c.l.b16 %v156
    %v196 = vunpack.c.l.b16 %v157
    %v197 = vunpack.c.l.b16 %v158
    %v198 = vunpack.c.l.b16 %v159
    %v199 = vunpack.c.l.b16 %v160
    %v200 = vunpack.c.l.b16 %v161
    %v201 = vunpack.c.l.b16 %v162
    %v202 = vpack.c.b16 %v187, %v186
    %v203 = vpack.c.b16 %v189, %v188
    %v204 = vpack.c.b16 %v191, %v190
    %v205 = vpack.c.b16 %v193, %v192
    %v206 = vpack.c.b16 %v195, %v194
    %v207 = vpack.c.b16 %v197, %v196
    %v208 = vpack.c.b16 %v199, %v198
    %v209 = vpack.c.b16 %v201, %v200
    %218 = vmatprep.subr.bf16.mxu0 0
    %219 = vmatpush1.bf16.msra.mxu0 %v202
    %220 = vmatprep.subr.bf16.mxu0 0
    %221 = vmatpush1.bf16.msra.mxu0 %v203
    %222 = vmatprep.subr.bf16.mxu0 0
    %223 = vmatpush1.bf16.msra.mxu0 %v204
    %224 = vmatprep.subr.bf16.mxu0 0
    %225 = vmatpush1.bf16.msra.mxu0 %v205
    %226 = vmatprep.subr.bf16.mxu0 0
    %227 = vmatpush1.bf16.msra.mxu0 %v206
    %228 = vmatprep.subr.bf16.mxu0 0
    %229 = vmatpush1.bf16.msra.mxu0 %v207
    %230 = vmatprep.subr.bf16.mxu0 0
    %231 = vmatpush1.bf16.msra.mxu0 %v208
    %232 = vmatprep.subr.bf16.mxu0 0
    %233 = vmatpush1.bf16.msra.mxu0 %v209
    %234 = vmatprep.subr.bf16.mxu0 0
    %235 = vmatpush1.bf16.msra.mxu0 0
    %236 = vmatprep.subr.bf16.mxu0 0
    %237 = vmatpush1.bf16.msra.mxu0 0
    %238 = vmatprep.subr.bf16.mxu0 0
    %239 = vmatpush1.bf16.msra.mxu0 0
    %240 = vmatprep.subr.bf16.mxu0 0
    %241 = vmatpush1.bf16.msra.mxu0 0
    %242 = vmatprep.subr.bf16.mxu0 0
    %243 = vmatpush1.bf16.msra.mxu0 0
    %244 = vmatprep.subr.bf16.mxu0 0
    %245 = vmatpush1.bf16.msra.mxu0 0
    %246 = vmatprep.subr.bf16.mxu0 0
    %247 = vmatpush1.bf16.msra.mxu0 0
    %248 = vmatprep.subr.bf16.mxu0 0
    %249 = vmatpush1.bf16.msra.mxu0 0
    %250 = vmatprep.mubr.bf16.mxu0 0
    %251 = vmatmul.mubr.bf16.gmra.mrb[0].mxu0 %v146
    %v252 = vpop.f32.mrb[0].mxu0
    %v253 = vadd.f32 %v168, %v252
    %v254 = vpop.f32.mrb[0].mxu0
    %v255 = vpop.f32.mrb[0].mxu0
    %v256 = vpop.f32.mrb[0].mxu0
    %257 = vdwg.mxu0
    %v258 = vmax.f32 %v253, 0.0
    %v259 = vpack.c.bf16 %v258, %v258
    %v260 = vld [vmem:[#allocation8] sm:$0xff]
    %v261 = vld [vmem:[#allocation8 + $0x8] sm:$0xff]
    %v262 = vld [vmem:[#allocation8 + $0x10] sm:$0xff]
    %v263 = vld [vmem:[#allocation8 + $0x18] sm:$0xff]
    %v264 = vld [vmem:[#allocation8 + $0x20] sm:$0xff]
    %v265 = vld [vmem:[#allocation8 + $0x28] sm:$0xff]
    %v266 = vld [vmem:[#allocation8 + $0x30] sm:$0xff]
    %v267 = vld [vmem:[#allocation8 + $0x38] sm:$0xff]
    %v268 = vld [vmem:[#allocation8 + $0x40] sm:$0xff]
    %v269 = vld [vmem:[#allocation8 + $0x48] sm:$0xff]
    %v270 = vld [vmem:[#allocation8 + $0x50] sm:$0xff]
    %v271 = vld [vmem:[#allocation8 + $0x58] sm:$0xff]
    %v272 = vld [vmem:[#allocation8 + $0x60] sm:$0xff]
    %v273 = vld [vmem:[#allocation8 + $0x68] sm:$0xff]
    %v274 = vld [vmem:[#allocation8 + $0x70] sm:$0xff]
    %v275 = vld [vmem:[#allocation8 + $0x78] sm:$0xff]
    %v276 = vld [vmem:[%s6] sm:$0x3]
    %v278 = vlaneseq
    %v279 = vshrl.u32 %v278, 7
    %v280 = vsub.s32 0, %v279
    %v281 = vrot.slane %v276, %v280
    %v282 = vlaneseq
    %v283 = vshrl.u32 %v282, 7
    %v284 = vsub.s32 1, %v283
    %v285 = vrot.slane %v276, %v284
    %v304 = vunpack.c.l.b16 %v260
    %v305 = vunpack.c.h.b16 %v260
    %v306 = vunpack.c.l.b16 %v261
    %v307 = vunpack.c.h.b16 %v261
    %v308 = vunpack.c.l.b16 %v262
    %v309 = vunpack.c.h.b16 %v262
    %v310 = vunpack.c.l.b16 %v263
    %v311 = vunpack.c.h.b16 %v263
    %v312 = vunpack.c.l.b16 %v264
    %v313 = vunpack.c.h.b16 %v264
    %v314 = vunpack.c.l.b16 %v265
    %v315 = vunpack.c.h.b16 %v265
    %v316 = vunpack.c.l.b16 %v266
    %v317 = vunpack.c.h.b16 %v266
    %v318 = vunpack.c.l.b16 %v267
    %v319 = vunpack.c.h.b16 %v267
    %v320 = vunpack.c.l.b16 %v268
    %v321 = vunpack.c.h.b16 %v268
    %v322 = vunpack.c.l.b16 %v269
    %v323 = vunpack.c.h.b16 %v269
    %v324 = vunpack.c.l.b16 %v270
    %v325 = vunpack.c.h.b16 %v270
    %v326 = vunpack.c.l.b16 %v271
    %v327 = vunpack.c.h.b16 %v271
    %v328 = vunpack.c.l.b16 %v272
    %v329 = vunpack.c.h.b16 %v272
    %v330 = vunpack.c.l.b16 %v273
    %v331 = vunpack.c.h.b16 %v273
    %v332 = vunpack.c.l.b16 %v274
    %v333 = vunpack.c.h.b16 %v274
    %v334 = vunpack.c.l.b16 %v275
    %v335 = vunpack.c.h.b16 %v275
    %v336 = vpack.c.b16 %v306, %v304
    %v337 = vpack.c.b16 %v307, %v305
    %v338 = vpack.c.b16 %v310, %v308
    %v339 = vpack.c.b16 %v311, %v309
    %v340 = vpack.c.b16 %v314, %v312
    %v341 = vpack.c.b16 %v315, %v313
    %v342 = vpack.c.b16 %v318, %v316
    %v343 = vpack.c.b16 %v319, %v317
    %v344 = vpack.c.b16 %v322, %v320
    %v345 = vpack.c.b16 %v323, %v321
    %v346 = vpack.c.b16 %v326, %v324
    %v347 = vpack.c.b16 %v327, %v325
    %v348 = vpack.c.b16 %v330, %v328
    %v349 = vpack.c.b16 %v331, %v329
    %v350 = vpack.c.b16 %v334, %v332
    %v351 = vpack.c.b16 %v335, %v333
    %368 = vmatprep.subr.bf16.mxu0 %v337
    %369 = vmatpush1.bf16.msra.mxu0 %v336
    %370 = vmatprep.subr.bf16.mxu0 %v339
    %371 = vmatpush1.bf16.msra.mxu0 %v338
    %372 = vmatprep.subr.bf16.mxu0 %v341
    %373 = vmatpush1.bf16.msra.mxu0 %v340
    %374 = vmatprep.subr.bf16.mxu0 %v343
    %375 = vmatpush1.bf16.msra.mxu0 %v342
    %376 = vmatprep.subr.bf16.mxu0 %v345
    %377 = vmatpush1.bf16.msra.mxu0 %v344
    %378 = vmatprep.subr.bf16.mxu0 %v347
    %379 = vmatpush1.bf16.msra.mxu0 %v346
    %380 = vmatprep.subr.bf16.mxu0 %v349
    %381 = vmatpush1.bf16.msra.mxu0 %v348
    %382 = vmatprep.subr.bf16.mxu0 %v351
    %383 = vmatpush1.bf16.msra.mxu0 %v350
    %384 = vmatprep.subr.bf16.mxu0 0
    %385 = vmatpush1.bf16.msra.mxu0 0
    %386 = vmatprep.subr.bf16.mxu0 0
    %387 = vmatpush1.bf16.msra.mxu0 0
    %388 = vmatprep.subr.bf16.mxu0 0
    %389 = vmatpush1.bf16.msra.mxu0 0
    %390 = vmatprep.subr.bf16.mxu0 0
    %391 = vmatpush1.bf16.msra.mxu0 0
    %392 = vmatprep.subr.bf16.mxu0 0
    %393 = vmatpush1.bf16.msra.mxu0 0
    %394 = vmatprep.subr.bf16.mxu0 0
    %395 = vmatpush1.bf16.msra.mxu0 0
    %396 = vmatprep.subr.bf16.mxu0 0
    %397 = vmatpush1.bf16.msra.mxu0 0
    %398 = vmatprep.subr.bf16.mxu0 0
    %399 = vmatpush1.bf16.msra.mxu0 0
    %400 = vmatprep.mubr.bf16.mxu0 0
    %401 = vmatmul.mubr.bf16.gmra.mrb[0].mxu0 %v259
    %v402 = vpop.f32.mrb[0].mxu0
    %v403 = vadd.f32 %v281, %v402
    %v404 = vpop.f32.mrb[0].mxu0
    %v405 = vadd.f32 %v285, %v404
    %v406 = vpop.f32.mrb[0].mxu0
    %v407 = vpop.f32.mrb[0].mxu0
    %408 = vdwg.mxu0
    %409 = vst [vmem:[#allocation10] sm:$0xff] %v403
    %v410 = vmax.f32 %v405, -20.0
    %v411 = vmin.f32 %v410, 2.0
    %412 = vst [vmem:[#allocation11] sm:$0xff] %v411
    // Predicated region
    $region46: #{tpu_custom_call.1} parent=1 // pred_check
      _
    $region47: #{tpu_custom_call.1} parent=1 // pred_check_branch
      %414 = sbr.rel (0) target = $region49
    $region48: #{tpu_custom_call.1} parent=1 // pred_region
      %s416 = ssub.s32 128, 128
      %417 = vsyncadd [#allocation4], %s416
      %s419 = sshll.u32 [#allocation10], 4
      %s420 = int_to_ptr.vmem [resolvable:$true] %s419
      %422 = dma.vmem_to_hbm [thread:$0]  %s420, 128, %s7, [#allocation4]
    $region49: #{tpu_custom_call.1} parent=1 // pred_fallthru
      _
    // Predicated region
    $region50: #{tpu_custom_call.1} parent=1 // pred_check
      _
    $region51: #{tpu_custom_call.1} parent=1 // pred_check_branch
      %424 = sbr.rel (0) target = $region53
    $region52: #{tpu_custom_call.1} parent=1 // pred_region
      %s426 = ssub.s32 128, 128
      %427 = vsyncadd [#allocation12], %s426
      %s429 = sshll.u32 [#allocation11], 4
      %s430 = int_to_ptr.vmem [resolvable:$true] %s429
      %432 = dma.vmem_to_hbm [thread:$0]  %s430, 128, %s8, [#allocation12]
    $region53: #{tpu_custom_call.1} parent=1 // pred_fallthru
      _
    // Predicated region
    $region54: #{tpu_custom_call.1} parent=1 // pred_check
      _
    $region55: #{tpu_custom_call.1} parent=1 // pred_check_branch
      %434 = sbr.rel (0) target = $region57
    $region56: #{tpu_custom_call.1} parent=1 // pred_region
      %435 = dma.done [#allocation4], 128
    $region57: #{tpu_custom_call.1} parent=1 // pred_fallthru
      _
    // Predicated region
    $region58: #{tpu_custom_call.1} parent=1 // pred_check
      _
    $region59: #{tpu_custom_call.1} parent=1 // pred_check_branch
      %437 = sbr.rel (0) target = $region61
    $region60: #{tpu_custom_call.1} parent=1 // pred_region
      %438 = dma.done [#allocation12], 128
    $region61: #{tpu_custom_call.1} parent=1 // pred_fallthru
      _
    %439 = vsyncpa [#allocation3], 1
    %440 = vsyncpa [#allocation6], 1
    %441 = vsyncpa [#allocation9], 1
    %442 = vsyncpa [#allocation4], 1
    %443 = vsyncpa [#allocation12], 1

</llo_original>
